<compile_context>
chip_gen: v6e
topology: v6e:2x2x1
jax: 0.10.0
libtpu: 0.0.40
codegen_flags: <defaults>
</compile_context>

<pallas_src>
import functools

import jax
import jax.numpy as jnp
from jax.experimental import pallas as pl
from jax.experimental.pallas import tpu as pltpu

LANE = 128


def _round_up(x, m):
    return ((x + m - 1) // m) * m


def gnn_kernel(xn1_ref, xn2_ref, xe_ref, keep_ref,
               wn1_ref, bn1_ref, we1_ref, be1_ref,
               w2s_ref, bsum_ref, wf1_ref, bf1_ref, wf2_ref, bf2_ref,
               out_ref):
    """One grid step == one batch tile of Bt elements.

    xn1_ref / xn2_ref : (Bt, N, Dn)  node features, natural (unpadded) feature dim
    xe_ref            : (Bt, N, De)  edge features, natural feature dim
    keep_ref          : (Bt, N, 1)   f32 keep = 1 - padding_mask
    weights           : resident (constant index_map); output dim padded to Dop=128
    out_ref           : (Bt, Dop)    f32, lane-dense
    """
    Bt, N, Dn = xn1_ref.shape
    De = xe_ref.shape[-1]
    Dop = out_ref.shape[-1]
    cdt = wn1_ref.dtype                      # compute dtype for MXU inputs (bf16/f32)

    # ---- first Linear + ReLU, flattened so the MXU sees M = Bt*N ----------------
    xn1 = xn1_ref[...].reshape(Bt * N, Dn)
    xn2 = xn2_ref[...].reshape(Bt * N, Dn)
    xe = xe_ref[...].reshape(Bt * N, De)
    bn1 = bn1_ref[...]

    a1 = jnp.maximum(
        jnp.dot(xn1, wn1_ref[...], preferred_element_type=jnp.float32) + bn1, 0.0)
    a2 = jnp.maximum(
        jnp.dot(xn2, wn1_ref[...], preferred_element_type=jnp.float32) + bn1, 0.0)
    ae = jnp.maximum(
        jnp.dot(xe, we1_ref[...], preferred_element_type=jnp.float32) + be1_ref[...],
        0.0)

    # ---- masked per-batch reduction: VPU mask-multiply + sublane sum, all f32 ---
    keep = keep_ref[...]                                           # (Bt, N, 1) f32
    sn = jnp.sum(keep * (a1 + a2).reshape(Bt, N, Dop), axis=1)     # (Bt, Dop)
    se = jnp.sum(keep * ae.reshape(Bt, N, Dop), axis=1)            # (Bt, Dop)
    kc = jnp.sum(keep, axis=1)                                     # (Bt, 1)

    # ---- second Linears fused into ONE K = 2*Dop matmul on the SUMMED rows.
    # Each kept row contributed (bn2 + bn2 + be2) in the reference, hence kc*bsum.
    s_cat = jnp.concatenate([sn, se], axis=-1).astype(cdt)         # (Bt, 2*Dop)
    structural = (jnp.dot(s_cat, w2s_ref[...], preferred_element_type=jnp.float32)
                  + kc * bsum_ref[...])                            # (Bt, Dop) f32

    # ---- final MLP ---------------------------------------------------------------
    h = jnp.maximum(
        jnp.dot(structural.astype(cdt), wf1_ref[...],
                preferred_element_type=jnp.float32) + bf1_ref[...], 0.0)
    out_ref[...] = (jnp.dot(h.astype(cdt), wf2_ref[...],
                            preferred_element_type=jnp.float32) + bf2_ref[...])


@functools.partial(jax.jit, static_argnames=("compute_dtype", "batch_tile"))
def simple_gnn_pallas(node1, node2, edge, padding_mask, params,
                      compute_dtype=jnp.bfloat16, batch_tile=256):
    """node1/node2: (B, N, Dn); edge: (B, N, De); padding_mask: (B, N) bool."""
    B, N, Dn = node1.shape
    De = edge.shape[-1]
    Do = params["wn2"].shape[-1]
    Dop = _round_up(Do, LANE)

    # Batch tile: at small B use a single block (block dim == full dim is always
    # legal); at large B use a sublane-aligned tile that divides the padded batch.
    # On v7x cap batch_tile <= B//2 so the grid has >= 2 steps (2 TensorCores) and
    # size it against 64 MiB VMEM.
    if B <= batch_tile:
        Bt, B_pad = B, B
    else:
        Bt = _round_up(batch_tile, 8)
        B_pad = _round_up(B, Bt)

    def pad_batch(x):
        if B_pad == B:
            return x
        return jnp.pad(x, ((0, B_pad - B),) + ((0, 0),) * (x.ndim - 1))

    # Activations keep their NATURAL feature widths (no 128-lane pad in HBM) and
    # node1/node2 are passed separately (no host-side concat); cast to bf16 here.
    xn1 = pad_batch(node1.astype(compute_dtype))
    xn2 = pad_batch(node2.astype(compute_dtype))
    xe = pad_batch(edge.astype(compute_dtype))
    # padded batch rows get keep == 0, so they contribute nothing and are sliced off.
    keep = pad_batch((1.0 - padding_mask.astype(jnp.float32))[..., None])  # (B_pad,N,1)

    def pad_w(w, rows, cols):
        return jnp.pad(w.astype(compute_dtype),
                       ((0, rows - w.shape[0]), (0, cols - w.shape[1])))

    def pad_b(b):  # biases stay f32 (epilogue is f32)
        return jnp.pad(b.astype(jnp.float32), ((0, 0), (0, Dop - b.shape[-1])))

    # Only the OUTPUT dim of weights is lane-padded (Do -> Dop); contraction dims
    # stay natural.  Second-layer weights are stacked for the fused K=2*Dop matmul.
    wn1 = pad_w(params["wn1"], Dn, Dop)
    we1 = pad_w(params["we1"], De, Dop)
    w2s = jnp.concatenate([pad_w(params["wn2"], Dop, Dop),
                           pad_w(params["we2"], Dop, Dop)], axis=0)      # (2*Dop, Dop)
    wf1 = pad_w(params["wf1"], Dop, Dop)
    wf2 = pad_w(params["wf2"], Dop, Dop)
    bn1 = pad_b(params["bn1"]); be1 = pad_b(params["be1"])
    bsum = pad_b(2.0 * params["bn2"] + params["be2"])                    # 2*bn2 + be2
    bf1 = pad_b(params["bf1"]); bf2 = pad_b(params["bf2"])

    act_spec = lambda shp: pl.BlockSpec((Bt,) + shp[1:], lambda b: (b, 0, 0))
    # weights/biases: constant index_map -> resident across grid steps (not re-DMA'd).
    w_spec = lambda shp: pl.BlockSpec(shp, lambda b: (0,) * len(shp))

    itm = jnp.dtype(compute_dtype).itemsize
    flops = int(B_pad * (2 * N * (2 * Dn + De) * Dop + 8 * Dop * Dop))
    bytes_accessed = int(
        (2 * B_pad * N * Dn + B_pad * N * De) * itm      # activations (unpadded)
        + B_pad * N * 4 + B_pad * Dop * 4                # keep mask + output
        + (Dn + De + 4 * Dop) * Dop * itm + 5 * Dop * 4)  # resident weights/biases

    grid_spec = pltpu.PrefetchScalarGridSpec(
        num_scalar_prefetch=0,
        grid=(B_pad // Bt,),
        in_specs=[
            act_spec(xn1.shape), act_spec(xn2.shape), act_spec(xe.shape),
            act_spec(keep.shape),
            w_spec(wn1.shape), w_spec(bn1.shape),
            w_spec(we1.shape), w_spec(be1.shape),
            w_spec(w2s.shape), w_spec(bsum.shape),
            w_spec(wf1.shape), w_spec(bf1.shape),
            w_spec(wf2.shape), w_spec(bf2.shape),
        ],
        out_specs=pl.BlockSpec((Bt, Dop), lambda b: (b, 0)),
    )

    out = pl.pallas_call(
        gnn_kernel,
        out_shape=jax.ShapeDtypeStruct((B_pad, Dop), jnp.float32),
        grid_spec=grid_spec,
        compiler_params=pltpu.CompilerParams(
            dimension_semantics=("parallel",)),   # batch-tile axis; shards TCs on v7x
        cost_estimate=pl.CostEstimate(
            flops=flops, transcendentals=0, bytes_accessed=bytes_accessed),
    )(xn1, xn2, xe, keep,
      wn1, bn1, we1, be1, w2s, bsum, wf1, bf1, wf2, bf2)

    return out[:B, :Do]


def init_params(key, node_dim, edge_dim, out_dim):
    """nn.Linear-style init (uniform +/- 1/sqrt(fan_in)); weights stored (in, out)."""
    def linear(k, fan_in, fan_out):
        kw, kb = jax.random.split(k)
        bound = 1.0 / jnp.sqrt(fan_in)
        w = jax.random.uniform(kw, (fan_in, fan_out), jnp.float32, -bound, bound)
        b = jax.random.uniform(kb, (1, fan_out), jnp.float32, -bound, bound)
        return w, b

    ks = jax.random.split(key, 6)
    wn1, bn1 = linear(ks[0], node_dim, out_dim)
    wn2, bn2 = linear(ks[1], out_dim, out_dim)
    we1, be1 = linear(ks[2], edge_dim, out_dim)
    we2, be2 = linear(ks[3], out_dim, out_dim)
    wf1, bf1 = linear(ks[4], out_dim, out_dim)
    wf2, bf2 = linear(ks[5], out_dim, out_dim)
    return dict(wn1=wn1, bn1=bn1, wn2=wn2, bn2=bn2,
                we1=we1, be1=be1, we2=we2, be2=be2,
                wf1=wf1, bf1=bf1, wf2=wf2, bf2=bf2)


def simple_gnn_reference(node1, node2, edge, padding_mask, p):
    """Pure-JAX reference replicating the PyTorch forward exactly (f32)."""
    def mlp(x, w1, b1, w2, b2):
        return jnp.maximum(x @ w1 + b1, 0.0) @ w2 + b2
    h1 = mlp(node1, p["wn1"], p["bn1"], p["wn2"], p["bn2"])
    h2 = mlp(node2, p["wn1"], p["bn1"], p["wn2"], p["bn2"])
    he = mlp(edge, p["we1"], p["be1"], p["we2"], p["be2"])
    c = h1 + h2 + he
    c = jnp.where(padding_mask[..., None], 0.0, c)
    s = c.sum(axis=1)
    return mlp(s, p["wf1"], p["bf1"], p["wf2"], p["bf2"])


if __name__ == "__main__":
    B, N = 2, 8
    NODE_DIM, EDGE_DIM, OUT_DIM = 16, 8, 32

    key = jax.random.PRNGKey(0)
    k1, k2, k3, k4, kp = jax.random.split(key, 5)
    node1 = jax.random.normal(k1, (B, N, NODE_DIM), jnp.float32)
    node2 = jax.random.normal(k2, (B, N, NODE_DIM), jnp.float32)
    edge = jax.random.normal(k3, (B, N, EDGE_DIM), jnp.float32)
    # boolean padding mask: True = padded position (zeroed before the sum)
    padding_mask = jax.random.bernoulli(k4, 0.25, (B, N))

    params = init_params(kp, NODE_DIM, EDGE_DIM, OUT_DIM)
    ref = simple_gnn_reference(node1, node2, edge, padding_mask, params)

    # exact check of the kernel structure in f32
    out_f32 = jax.block_until_ready(
        simple_gnn_pallas(node1, node2, edge, padding_mask, params,
                          compute_dtype=jnp.float32))
    assert out_f32.shape == (B, OUT_DIM)
    assert jnp.allclose(out_f32, ref, atol=1e-3, rtol=1e-3), "f32 mismatch vs reference"

    # production path: bf16 MXU inputs, f32 accumulation/epilogue (looser tolerance)
    out_bf16 = jax.block_until_ready(
        simple_gnn_pallas(node1, node2, edge, padding_mask, params,
                          compute_dtype=jnp.bfloat16))
    assert out_bf16.shape == (B, OUT_DIM)
    assert jnp.allclose(out_bf16, ref, atol=1e-1, rtol=5e-2), "bf16 mismatch vs reference"

    print("KERNEL_OK")
</pallas_src>

<mosaic_0001>
module attributes {stable_mosaic.version = 11 : i64} {
  func.func @gnn_kernel(%arg0: i32, %arg1: memref<2x8x16xf32, #tpu.memory_space<vmem>>, %arg2: memref<2x8x16xf32, #tpu.memory_space<vmem>>, %arg3: memref<2x8x8xf32, #tpu.memory_space<vmem>>, %arg4: memref<2x8x1xf32, #tpu.memory_space<vmem>>, %arg5: memref<16x128xf32, #tpu.memory_space<vmem>>, %arg6: memref<1x128xf32, #tpu.memory_space<vmem>>, %arg7: memref<8x128xf32, #tpu.memory_space<vmem>>, %arg8: memref<1x128xf32, #tpu.memory_space<vmem>>, %arg9: memref<256x128xf32, #tpu.memory_space<vmem>>, %arg10: memref<1x128xf32, #tpu.memory_space<vmem>>, %arg11: memref<128x128xf32, #tpu.memory_space<vmem>>, %arg12: memref<1x128xf32, #tpu.memory_space<vmem>>, %arg13: memref<128x128xf32, #tpu.memory_space<vmem>>, %arg14: memref<1x128xf32, #tpu.memory_space<vmem>>, %arg15: memref<2x128xf32, #tpu.memory_space<vmem>>) attributes {dimension_semantics = [#tpu.dimension_semantics<parallel>], iteration_bounds = array<i64: 1>, scalar_prefetch = 0 : i64, scratch_operands = 0 : i64, tpu.core_type = #tpu.core_type<tc>, window_params = [{transform_indices = @transform_0, window_bounds = array<i64: 2, 8, 16>}, {transform_indices = @transform_1, window_bounds = array<i64: 2, 8, 16>}, {transform_indices = @transform_2, window_bounds = array<i64: 2, 8, 8>}, {transform_indices = @transform_3, window_bounds = array<i64: 2, 8, 1>}, {pipeline_mode = #tpu.pipeline_mode<synchronous>, transform_indices = @transform_4, window_bounds = array<i64: 16, 128>}, {pipeline_mode = #tpu.pipeline_mode<synchronous>, transform_indices = @transform_5, window_bounds = array<i64: 1, 128>}, {pipeline_mode = #tpu.pipeline_mode<synchronous>, transform_indices = @transform_6, window_bounds = array<i64: 8, 128>}, {pipeline_mode = #tpu.pipeline_mode<synchronous>, transform_indices = @transform_7, window_bounds = array<i64: 1, 128>}, {pipeline_mode = #tpu.pipeline_mode<synchronous>, transform_indices = @transform_8, window_bounds = array<i64: 256, 128>}, {pipeline_mode = #tpu.pipeline_mode<synchronous>, transform_indices = @transform_9, window_bounds = array<i64: 1, 128>}, {pipeline_mode = #tpu.pipeline_mode<synchronous>, transform_indices = @transform_10, window_bounds = array<i64: 128, 128>}, {pipeline_mode = #tpu.pipeline_mode<synchronous>, transform_indices = @transform_11, window_bounds = array<i64: 1, 128>}, {pipeline_mode = #tpu.pipeline_mode<synchronous>, transform_indices = @transform_12, window_bounds = array<i64: 128, 128>}, {pipeline_mode = #tpu.pipeline_mode<synchronous>, transform_indices = @transform_13, window_bounds = array<i64: 1, 128>}, {transform_indices = @transform_14, window_bounds = array<i64: 2, 128>}]} {
    %c0 = arith.constant 0 : index
    %c0_0 = arith.constant 0 : index
    %c0_1 = arith.constant 0 : index
    %0 = vector.load %arg1[%c0, %c0_0, %c0_1] : memref<2x8x16xf32, #tpu.memory_space<vmem>>, vector<2x8x16xf32>
    %1 = vector.shape_cast %0 : vector<2x8x16xf32> to vector<16x16xf32>
    %c0_2 = arith.constant 0 : index
    %c0_3 = arith.constant 0 : index
    %c0_4 = arith.constant 0 : index
    %2 = vector.load %arg2[%c0_2, %c0_3, %c0_4] : memref<2x8x16xf32, #tpu.memory_space<vmem>>, vector<2x8x16xf32>
    %3 = vector.shape_cast %2 : vector<2x8x16xf32> to vector<16x16xf32>
    %c0_5 = arith.constant 0 : index
    %c0_6 = arith.constant 0 : index
    %c0_7 = arith.constant 0 : index
    %4 = vector.load %arg3[%c0_5, %c0_6, %c0_7] : memref<2x8x8xf32, #tpu.memory_space<vmem>>, vector<2x8x8xf32>
    %5 = vector.shape_cast %4 : vector<2x8x8xf32> to vector<16x8xf32>
    %c0_8 = arith.constant 0 : index
    %c0_9 = arith.constant 0 : index
    %6 = vector.load %arg6[%c0_8, %c0_9] : memref<1x128xf32, #tpu.memory_space<vmem>>, vector<1x128xf32>
    %c0_10 = arith.constant 0 : index
    %c0_11 = arith.constant 0 : index
    %7 = vector.load %arg5[%c0_10, %c0_11] : memref<16x128xf32, #tpu.memory_space<vmem>>, vector<16x128xf32>
    %cst = arith.constant dense<0.000000e+00> : vector<16x128xf32>
    %8 = tpu.matmul %1, %7, %cst {dimension_numbers = #tpu.dot_dimension_numbers<[1], [0], [0], [1], [0, 0, 1, 1], [], []>} : vector<16x16xf32>, vector<16x128xf32>, vector<16x128xf32> -> vector<16x128xf32>
    %9 = vector.broadcast %6 : vector<1x128xf32> to vector<16x128xf32>
    %10 = arith.addf %8, %9 : vector<16x128xf32>
    %cst_12 = arith.constant 0.000000e+00 : f32
    %11 = vector.broadcast %cst_12 : f32 to vector<16x128xf32>
    %12 = arith.maximumf %10, %11 : vector<16x128xf32>
    %c0_13 = arith.constant 0 : index
    %c0_14 = arith.constant 0 : index
    %13 = vector.load %arg5[%c0_13, %c0_14] : memref<16x128xf32, #tpu.memory_space<vmem>>, vector<16x128xf32>
    %cst_15 = arith.constant dense<0.000000e+00> : vector<16x128xf32>
    %14 = tpu.matmul %3, %13, %cst_15 {dimension_numbers = #tpu.dot_dimension_numbers<[1], [0], [0], [1], [0, 0, 1, 1], [], []>} : vector<16x16xf32>, vector<16x128xf32>, vector<16x128xf32> -> vector<16x128xf32>
    %15 = vector.broadcast %6 : vector<1x128xf32> to vector<16x128xf32>
    %16 = arith.addf %14, %15 : vector<16x128xf32>
    %cst_16 = arith.constant 0.000000e+00 : f32
    %17 = vector.broadcast %cst_16 : f32 to vector<16x128xf32>
    %18 = arith.maximumf %16, %17 : vector<16x128xf32>
    %c0_17 = arith.constant 0 : index
    %c0_18 = arith.constant 0 : index
    %19 = vector.load %arg7[%c0_17, %c0_18] : memref<8x128xf32, #tpu.memory_space<vmem>>, vector<8x128xf32>
    %cst_19 = arith.constant dense<0.000000e+00> : vector<16x128xf32>
    %20 = tpu.matmul %5, %19, %cst_19 {dimension_numbers = #tpu.dot_dimension_numbers<[1], [0], [0], [1], [0, 0, 1, 1], [], []>} : vector<16x8xf32>, vector<8x128xf32>, vector<16x128xf32> -> vector<16x128xf32>
    %c0_20 = arith.constant 0 : index
    %c0_21 = arith.constant 0 : index
    %21 = vector.load %arg8[%c0_20, %c0_21] : memref<1x128xf32, #tpu.memory_space<vmem>>, vector<1x128xf32>
    %22 = vector.broadcast %21 : vector<1x128xf32> to vector<16x128xf32>
    %23 = arith.addf %20, %22 : vector<16x128xf32>
    %cst_22 = arith.constant 0.000000e+00 : f32
    %24 = vector.broadcast %cst_22 : f32 to vector<16x128xf32>
    %25 = arith.maximumf %23, %24 : vector<16x128xf32>
    %c0_23 = arith.constant 0 : index
    %c0_24 = arith.constant 0 : index
    %c0_25 = arith.constant 0 : index
    %26 = vector.load %arg4[%c0_23, %c0_24, %c0_25] : memref<2x8x1xf32, #tpu.memory_space<vmem>>, vector<2x8x1xf32>
    %27 = arith.addf %12, %18 : vector<16x128xf32>
    %28 = vector.shape_cast %27 : vector<16x128xf32> to vector<2x8x128xf32>
    %29 = vector.broadcast %26 : vector<2x8x1xf32> to vector<2x8x128xf32>
    %30 = arith.mulf %29, %28 : vector<2x8x128xf32>
    %cst_26 = arith.constant dense<0.000000e+00> : vector<2x128xf32>
    %31 = vector.multi_reduction <add>, %30, %cst_26 [1] : vector<2x8x128xf32> to vector<2x128xf32>
    %32 = vector.shape_cast %25 : vector<16x128xf32> to vector<2x8x128xf32>
    %33 = vector.broadcast %26 : vector<2x8x1xf32> to vector<2x8x128xf32>
    %34 = arith.mulf %33, %32 : vector<2x8x128xf32>
    %cst_27 = arith.constant dense<0.000000e+00> : vector<2x128xf32>
    %35 = vector.multi_reduction <add>, %34, %cst_27 [1] : vector<2x8x128xf32> to vector<2x128xf32>
    %cst_28 = arith.constant dense<0.000000e+00> : vector<2x1xf32>
    %36 = vector.multi_reduction <add>, %26, %cst_28 [1] : vector<2x8x1xf32> to vector<2x1xf32>
    %37 = tpu.concatenate %31, %35 in 1 : vector<2x128xf32>, vector<2x128xf32> -> vector<2x256xf32>
    %c0_29 = arith.constant 0 : index
    %c0_30 = arith.constant 0 : index
    %38 = vector.load %arg9[%c0_29, %c0_30] : memref<256x128xf32, #tpu.memory_space<vmem>>, vector<256x128xf32>
    %cst_31 = arith.constant dense<0.000000e+00> : vector<2x128xf32>
    %39 = tpu.matmul %37, %38, %cst_31 {dimension_numbers = #tpu.dot_dimension_numbers<[1], [0], [0], [1], [0, 0, 1, 1], [], []>} : vector<2x256xf32>, vector<256x128xf32>, vector<2x128xf32> -> vector<2x128xf32>
    %c0_32 = arith.constant 0 : index
    %c0_33 = arith.constant 0 : index
    %40 = vector.load %arg10[%c0_32, %c0_33] : memref<1x128xf32, #tpu.memory_space<vmem>>, vector<1x128xf32>
    %41 = vector.broadcast %36 : vector<2x1xf32> to vector<2x128xf32>
    %42 = vector.broadcast %40 : vector<1x128xf32> to vector<2x128xf32>
    %43 = arith.mulf %41, %42 : vector<2x128xf32>
    %44 = arith.addf %39, %43 : vector<2x128xf32>
    %c0_34 = arith.constant 0 : index
    %c0_35 = arith.constant 0 : index
    %45 = vector.load %arg11[%c0_34, %c0_35] : memref<128x128xf32, #tpu.memory_space<vmem>>, vector<128x128xf32>
    %cst_36 = arith.constant dense<0.000000e+00> : vector<2x128xf32>
    %46 = tpu.matmul %44, %45, %cst_36 {dimension_numbers = #tpu.dot_dimension_numbers<[1], [0], [0], [1], [0, 0, 1, 1], [], []>} : vector<2x128xf32>, vector<128x128xf32>, vector<2x128xf32> -> vector<2x128xf32>
    %c0_37 = arith.constant 0 : index
    %c0_38 = arith.constant 0 : index
    %47 = vector.load %arg12[%c0_37, %c0_38] : memref<1x128xf32, #tpu.memory_space<vmem>>, vector<1x128xf32>
    %48 = vector.broadcast %47 : vector<1x128xf32> to vector<2x128xf32>
    %49 = arith.addf %46, %48 : vector<2x128xf32>
    %cst_39 = arith.constant 0.000000e+00 : f32
    %50 = vector.broadcast %cst_39 : f32 to vector<2x128xf32>
    %51 = arith.maximumf %49, %50 : vector<2x128xf32>
    %c0_40 = arith.constant 0 : index
    %c0_41 = arith.constant 0 : index
    %52 = vector.load %arg13[%c0_40, %c0_41] : memref<128x128xf32, #tpu.memory_space<vmem>>, vector<128x128xf32>
    %cst_42 = arith.constant dense<0.000000e+00> : vector<2x128xf32>
    %53 = tpu.matmul %51, %52, %cst_42 {dimension_numbers = #tpu.dot_dimension_numbers<[1], [0], [0], [1], [0, 0, 1, 1], [], []>} : vector<2x128xf32>, vector<128x128xf32>, vector<2x128xf32> -> vector<2x128xf32>
    %c0_43 = arith.constant 0 : index
    %c0_44 = arith.constant 0 : index
    %54 = vector.load %arg14[%c0_43, %c0_44] : memref<1x128xf32, #tpu.memory_space<vmem>>, vector<1x128xf32>
    %55 = vector.broadcast %54 : vector<1x128xf32> to vector<2x128xf32>
    %56 = arith.addf %53, %55 : vector<2x128xf32>
    %c0_45 = arith.constant 0 : index
    %c0_46 = arith.constant 0 : index
    %57 = vector.load %arg15[%c0_45, %c0_46] : memref<2x128xf32, #tpu.memory_space<vmem>>, vector<2x128xf32>
    tpu.vector_store %arg15[%c0_45, %c0_46], %56 {strides = array<i32>} : memref<2x128xf32, #tpu.memory_space<vmem>>, vector<2x128xf32>,
    return
  }
  func.func @transform_0(%arg0: i32) -> (i32, i32, i32) {
    %c0_i32 = arith.constant 0 : i32
    %c0_i32_0 = arith.constant 0 : i32
    %c0_i32_1 = arith.constant 0 : i32
    return %arg0, %c0_i32, %c0_i32_0 : i32, i32, i32
  }
  func.func @transform_1(%arg0: i32) -> (i32, i32, i32) {
    %c0_i32 = arith.constant 0 : i32
    %c0_i32_0 = arith.constant 0 : i32
    %c0_i32_1 = arith.constant 0 : i32
    return %arg0, %c0_i32, %c0_i32_0 : i32, i32, i32
  }
  func.func @transform_2(%arg0: i32) -> (i32, i32, i32) {
    %c0_i32 = arith.constant 0 : i32
    %c0_i32_0 = arith.constant 0 : i32
    %c0_i32_1 = arith.constant 0 : i32
    return %arg0, %c0_i32, %c0_i32_0 : i32, i32, i32
  }
  func.func @transform_3(%arg0: i32) -> (i32, i32, i32) {
    %c0_i32 = arith.constant 0 : i32
    %c0_i32_0 = arith.constant 0 : i32
    %c0_i32_1 = arith.constant 0 : i32
    return %arg0, %c0_i32, %c0_i32_0 : i32, i32, i32
  }
  func.func @transform_4(%arg0: i32) -> (i32, i32) {
    %c0_i32 = arith.constant 0 : i32
    %c0_i32_0 = arith.constant 0 : i32
    %c0_i32_1 = arith.constant 0 : i32
    return %c0_i32, %c0_i32_0 : i32, i32
  }
  func.func @transform_5(%arg0: i32) -> (i32, i32) {
    %c0_i32 = arith.constant 0 : i32
    %c0_i32_0 = arith.constant 0 : i32
    %c0_i32_1 = arith.constant 0 : i32
    return %c0_i32, %c0_i32_0 : i32, i32
  }
  func.func @transform_6(%arg0: i32) -> (i32, i32) {
    %c0_i32 = arith.constant 0 : i32
    %c0_i32_0 = arith.constant 0 : i32
    %c0_i32_1 = arith.constant 0 : i32
    return %c0_i32, %c0_i32_0 : i32, i32
  }
  func.func @transform_7(%arg0: i32) -> (i32, i32) {
    %c0_i32 = arith.constant 0 : i32
    %c0_i32_0 = arith.constant 0 : i32
    %c0_i32_1 = arith.constant 0 : i32
    return %c0_i32, %c0_i32_0 : i32, i32
  }
  func.func @transform_8(%arg0: i32) -> (i32, i32) {
    %c0_i32 = arith.constant 0 : i32
    %c0_i32_0 = arith.constant 0 : i32
    %c0_i32_1 = arith.constant 0 : i32
    return %c0_i32, %c0_i32_0 : i32, i32
  }
  func.func @transform_9(%arg0: i32) -> (i32, i32) {
    %c0_i32 = arith.constant 0 : i32
    %c0_i32_0 = arith.constant 0 : i32
    %c0_i32_1 = arith.constant 0 : i32
    return %c0_i32, %c0_i32_0 : i32, i32
  }
  func.func @transform_10(%arg0: i32) -> (i32, i32) {
    %c0_i32 = arith.constant 0 : i32
    %c0_i32_0 = arith.constant 0 : i32
    %c0_i32_1 = arith.constant 0 : i32
    return %c0_i32, %c0_i32_0 : i32, i32
  }
  func.func @transform_11(%arg0: i32) -> (i32, i32) {
    %c0_i32 = arith.constant 0 : i32
    %c0_i32_0 = arith.constant 0 : i32
    %c0_i32_1 = arith.constant 0 : i32
    return %c0_i32, %c0_i32_0 : i32, i32
  }
  func.func @transform_12(%arg0: i32) -> (i32, i32) {
    %c0_i32 = arith.constant 0 : i32
    %c0_i32_0 = arith.constant 0 : i32
    %c0_i32_1 = arith.constant 0 : i32
    return %c0_i32, %c0_i32_0 : i32, i32
  }
  func.func @transform_13(%arg0: i32) -> (i32, i32) {
    %c0_i32 = arith.constant 0 : i32
    %c0_i32_0 = arith.constant 0 : i32
    %c0_i32_1 = arith.constant 0 : i32
    return %c0_i32, %c0_i32_0 : i32, i32
  }
  func.func @transform_14(%arg0: i32) -> (i32, i32) {
    %c0_i32 = arith.constant 0 : i32
    %c0_i32_0 = arith.constant 0 : i32
    return %arg0, %c0_i32 : i32, i32
  }
}

</mosaic_0001>

<llo_original>
// kernel: simple_gnn_pallas.1
$region0: #{simple_gnn_pallas.1}
  #allocation0 [shape = 'u32[]', space=smem, size = 0x4, offset = 0x4, fixed_abs, tag = 'smem constant byte address 0x4 - core index']
  #allocation1 [shape = 'u32[144,128]{1,0:T(1,128)}', space=vmem, size = 0x12000, scoped, tag = 'internal scratch']
  %s0 = inlined_call_operand.vmem [shape: f32[2,8,16], index: 0, kind: input, shape index: {}]
  %s1 = inlined_call_operand.vmem [shape: f32[2,8,16], index: 1, kind: input, shape index: {}]
  %s2 = inlined_call_operand.vmem [shape: f32[2,8,8], index: 2, kind: input, shape index: {}]
  %s3 = inlined_call_operand.vmem [shape: f32[2,8,1], index: 3, kind: input, shape index: {}]
  %s4 = inlined_call_operand.vmem [shape: f32[16,128], index: 4, kind: input, shape index: {}]
  %s5 = inlined_call_operand.vmem [shape: f32[1,128], index: 5, kind: input, shape index: {}]
  %s6 = inlined_call_operand.vmem [shape: f32[8,128], index: 6, kind: input, shape index: {}]
  %s7 = inlined_call_operand.vmem [shape: f32[1,128], index: 7, kind: input, shape index: {}]
  %s8 = inlined_call_operand.vmem [shape: f32[256,128], index: 8, kind: input, shape index: {}]
  %s9 = inlined_call_operand.vmem [shape: f32[1,128], index: 9, kind: input, shape index: {}]
  %s10 = inlined_call_operand.vmem [shape: f32[128,128], index: 10, kind: input, shape index: {}]
  %s11 = inlined_call_operand.vmem [shape: f32[1,128], index: 11, kind: input, shape index: {}]
  %s12 = inlined_call_operand.vmem [shape: f32[128,128], index: 12, kind: input, shape index: {}]
  %s13 = inlined_call_operand.vmem [shape: f32[1,128], index: 13, kind: input, shape index: {}]
  %s14 = inlined_call_operand.hbm [shape: f32[2,128], index: 14, kind: output, shape index: {}]
  %s15 = sld [smem:[#allocation0]]
  $region66: #{simple_gnn_pallas.1} parent=0
    _
  %s17 = ssub.s32 1, %s15
  %s18 = scalar_select 0, %s17, %s15
  $region1: #{simple_gnn_pallas.1} parent=0
    #allocation2 [shape = 'u8[1024]{0}', space=vmem, size = 0x400, scoped, tag = 'output window, operand 0, single buffered']
    #allocation3 [shape = 's32[1]{0}', space=sflag, size = 0x4, scoped, tag = 'scoped memory for simple_gnn_pallas.1']
    %19 = vsyncpa [#allocation3], 0
    // Predicated region
    $region2: #{simple_gnn_pallas.1} parent=1 // pred_check
      _
    $region3: #{simple_gnn_pallas.1} parent=1 // pred_check_branch
      %21 = sbr.rel (0) target = $region5
    $region4: #{simple_gnn_pallas.1} parent=1 // pred_region
      _
    $region5: #{simple_gnn_pallas.1} parent=1 // pred_fallthru
      _
    // Predicated region
    $region6: #{simple_gnn_pallas.1} parent=1 // pred_check
      _
    $region7: #{simple_gnn_pallas.1} parent=1 // pred_check_branch
      %23 = sbr.rel (0) target = $region9
    $region8: #{simple_gnn_pallas.1} parent=1 // pred_region
      _
    $region9: #{simple_gnn_pallas.1} parent=1 // pred_fallthru
      _
    // Predicated region
    $region10: #{simple_gnn_pallas.1} parent=1 // pred_check
      _
    $region11: #{simple_gnn_pallas.1} parent=1 // pred_check_branch
      %25 = sbr.rel (0) target = $region13
    $region12: #{simple_gnn_pallas.1} parent=1 // pred_region
      _
    $region13: #{simple_gnn_pallas.1} parent=1 // pred_fallthru
      _
    // Predicated region
    $region14: #{simple_gnn_pallas.1} parent=1 // pred_check
      _
    $region15: #{simple_gnn_pallas.1} parent=1 // pred_check_branch
      %27 = sbr.rel (0) target = $region17
    $region16: #{simple_gnn_pallas.1} parent=1 // pred_region
      _
    $region17: #{simple_gnn_pallas.1} parent=1 // pred_fallthru
      _
    // Predicated region
    $region18: #{simple_gnn_pallas.1} parent=1 // pred_check
      _
    $region19: #{simple_gnn_pallas.1} parent=1 // pred_check_branch
      %29 = sbr.rel (0) target = $region21
    $region20: #{simple_gnn_pallas.1} parent=1 // pred_region
      _
    $region21: #{simple_gnn_pallas.1} parent=1 // pred_fallthru
      _
    // Predicated region
    $region22: #{simple_gnn_pallas.1} parent=1 // pred_check
      _
    $region23: #{simple_gnn_pallas.1} parent=1 // pred_check_branch
      %31 = sbr.rel (0) target = $region25
    $region24: #{simple_gnn_pallas.1} parent=1 // pred_region
      _
    $region25: #{simple_gnn_pallas.1} parent=1 // pred_fallthru
      _
    // Predicated region
    $region26: #{simple_gnn_pallas.1} parent=1 // pred_check
      _
    $region27: #{simple_gnn_pallas.1} parent=1 // pred_check_branch
      %33 = sbr.rel (0) target = $region29
    $region28: #{simple_gnn_pallas.1} parent=1 // pred_region
      _
    $region29: #{simple_gnn_pallas.1} parent=1 // pred_fallthru
      _
    // Predicated region
    $region30: #{simple_gnn_pallas.1} parent=1 // pred_check
      _
    $region31: #{simple_gnn_pallas.1} parent=1 // pred_check_branch
      %35 = sbr.rel (0) target = $region33
    $region32: #{simple_gnn_pallas.1} parent=1 // pred_region
      _
    $region33: #{simple_gnn_pallas.1} parent=1 // pred_fallthru
      _
    // Predicated region
    $region34: #{simple_gnn_pallas.1} parent=1 // pred_check
      _
    $region35: #{simple_gnn_pallas.1} parent=1 // pred_check_branch
      %37 = sbr.rel (0) target = $region37
    $region36: #{simple_gnn_pallas.1} parent=1 // pred_region
      _
    $region37: #{simple_gnn_pallas.1} parent=1 // pred_fallthru
      _
    // Predicated region
    $region38: #{simple_gnn_pallas.1} parent=1 // pred_check
      _
    $region39: #{simple_gnn_pallas.1} parent=1 // pred_check_branch
      %39 = sbr.rel (0) target = $region41
    $region40: #{simple_gnn_pallas.1} parent=1 // pred_region
      _
    $region41: #{simple_gnn_pallas.1} parent=1 // pred_fallthru
      _
    // Predicated region
    $region42: #{simple_gnn_pallas.1} parent=1 // pred_check
      _
    $region43: #{simple_gnn_pallas.1} parent=1 // pred_check_branch
      %41 = sbr.rel (0) target = $region45
    $region44: #{simple_gnn_pallas.1} parent=1 // pred_region
      _
    $region45: #{simple_gnn_pallas.1} parent=1 // pred_fallthru
      _
    // Predicated region
    $region46: #{simple_gnn_pallas.1} parent=1 // pred_check
      _
    $region47: #{simple_gnn_pallas.1} parent=1 // pred_check_branch
      %43 = sbr.rel (0) target = $region49
    $region48: #{simple_gnn_pallas.1} parent=1 // pred_region
      _
    $region49: #{simple_gnn_pallas.1} parent=1 // pred_fallthru
      _
    // Predicated region
    $region50: #{simple_gnn_pallas.1} parent=1 // pred_check
      _
    $region51: #{simple_gnn_pallas.1} parent=1 // pred_check_branch
      %45 = sbr.rel (0) target = $region53
    $region52: #{simple_gnn_pallas.1} parent=1 // pred_region
      _
    $region53: #{simple_gnn_pallas.1} parent=1 // pred_fallthru
      _
    // Predicated region
    $region54: #{simple_gnn_pallas.1} parent=1 // pred_check
      _
    $region55: #{simple_gnn_pallas.1} parent=1 // pred_check_branch
      %47 = sbr.rel (0) target = $region57
    $region56: #{simple_gnn_pallas.1} parent=1 // pred_region
      _
    $region57: #{simple_gnn_pallas.1} parent=1 // pred_fallthru
      _
    %v48 = vld [vmem:[%s0] sm:$0xff]
    %v49 = vld [vmem:[%s0 + $0x8] sm:$0xff]
    %v50 = vld [vmem:[%s1] sm:$0xff]
    %v51 = vld [vmem:[%s1 + $0x8] sm:$0xff]
    %v52 = vld [vmem:[%s2] sm:$0xff]
    %v53 = vld [vmem:[%s2 + $0x8] sm:$0xff]
    %v54 = vld [vmem:[%s5] sm:$0x1]
    %v55 = vld [vmem:[%s4] sm:$0xff]
    %v56 = vld [vmem:[%s4 + $0x8] sm:$0xff]
    %v58 = vlaneseq
    %v59 = vshrl.u32 %v58, 7
    %v60 = vsub.s32 0, %v59
    %v61 = vrot.slane %v54, %v60
    %vm63 = vcmask 130048
    %v65 = vsel %vm63, %v48, 0
    %v68 = vsel %vm63, %v49, 0
    %70 = vmatprep.subr.mxu0 0.0
    %71 = vmatpush1.msra.mxu0 0.0
    %72 = vmatprep.subr.mxu0 0.0
    %73 = vmatpush1.msra.mxu0 0.0
    %74 = vmatprep.subr.mxu0 0.0
    %75 = vmatpush1.msra.mxu0 0.0
    %76 = vmatprep.subr.mxu0 0.0
    %77 = vmatpush1.msra.mxu0 0.0
    %78 = vmatprep.subr.mxu0 0.0
    %79 = vmatpush1.msra.mxu0 0.0
    %80 = vmatprep.subr.mxu0 0.0
    %81 = vmatpush1.msra.mxu0 0.0
    %82 = vmatprep.subr.mxu0 0.0
    %83 = vmatpush1.msra.mxu0 0.0
    %84 = vmatprep.subr.mxu0 0.0
    %85 = vmatpush1.msra.mxu0 0.0
    %86 = vmatprep.subr.mxu0 0.0
    %87 = vmatpush1.msra.mxu0 0.0
    %88 = vmatprep.subr.mxu0 0.0
    %89 = vmatpush1.msra.mxu0 0.0
    %90 = vmatprep.subr.mxu0 0.0
    %91 = vmatpush1.msra.mxu0 0.0
    %92 = vmatprep.subr.mxu0 0.0
    %93 = vmatpush1.msra.mxu0 0.0
    %94 = vmatprep.subr.mxu0 0.0
    %95 = vmatpush1.msra.mxu0 0.0
    %96 = vmatprep.subr.mxu0 0.0
    %97 = vmatpush1.msra.mxu0 0.0
    %98 = vmatprep.subr.mxu0 0.0
    %99 = vmatpush1.msra.mxu0 %v56
    %100 = vmatprep.subr.mxu0 0.0
    %101 = vmatpush1.msra.mxu0 %v55
    %102 = vmatprep.subr.mxu0 0.0
    %103 = vmatpush2.msra.mxu0 0.0
    %104 = vmatprep.subr.mxu0 0.0
    %105 = vmatpush2.msra.mxu0 0.0
    %106 = vmatprep.subr.mxu0 0.0
    %107 = vmatpush2.msra.mxu0 0.0
    %108 = vmatprep.subr.mxu0 0.0
    %109 = vmatpush2.msra.mxu0 0.0
    %110 = vmatprep.subr.mxu0 0.0
    %111 = vmatpush2.msra.mxu0 0.0
    %112 = vmatprep.subr.mxu0 0.0
    %113 = vmatpush2.msra.mxu0 0.0
    %114 = vmatprep.subr.mxu0 0.0
    %115 = vmatpush2.msra.mxu0 0.0
    %116 = vmatprep.subr.mxu0 0.0
    %117 = vmatpush2.msra.mxu0 0.0
    %118 = vmatprep.subr.mxu0 0.0
    %119 = vmatpush2.msra.mxu0 0.0
    %120 = vmatprep.subr.mxu0 0.0
    %121 = vmatpush2.msra.mxu0 0.0
    %122 = vmatprep.subr.mxu0 0.0
    %123 = vmatpush2.msra.mxu0 0.0
    %124 = vmatprep.subr.mxu0 0.0
    %125 = vmatpush2.msra.mxu0 0.0
    %126 = vmatprep.subr.mxu0 0.0
    %127 = vmatpush2.msra.mxu0 0.0
    %128 = vmatprep.subr.mxu0 0.0
    %129 = vmatpush2.msra.mxu0 0.0
    %130 = vmatprep.subr.mxu0 0.0
    %131 = vmatpush2.msra.mxu0 0.0
    %132 = vmatprep.subr.mxu0 0.0
    %133 = vmatpush2.msra.mxu0 0.0
    %134 = vmatprep.mubr.f32.mxu0 0.0
    %135 = vmatmul.mubr.f32.gmra.mxu0 %v65
    %v136 = vpop.f32.mrf.mxu0
    %v137 = vadd.f32 %v61, %v136
    %v138 = vpop.f32.mrf.mxu0
    %139 = vmatprep.mubr.f32.mxu0 0.0
    %140 = vmatmul.mubr.f32.gmra.mxu0 %v68
    %v141 = vpop.f32.mrf.mxu0
    %v142 = vadd.f32 %v61, %v141
    %v143 = vpop.f32.mrf.mxu0
    %144 = vdwg.mxu0
    %v145 = vmax.f32 %v137, 0.0
    %v146 = vmax.f32 %v142, 0.0
    %v148 = vsel %vm63, %v50, 0
    %v151 = vsel %vm63, %v51, 0
    %153 = vmatprep.subr.mxu0 0.0
    %154 = vmatpush1.msra.mxu0 0.0
    %155 = vmatprep.subr.mxu0 0.0
    %156 = vmatpush1.msra.mxu0 0.0
    %157 = vmatprep.subr.mxu0 0.0
    %158 = vmatpush1.msra.mxu0 0.0
    %159 = vmatprep.subr.mxu0 0.0
    %160 = vmatpush1.msra.mxu0 0.0
    %161 = vmatprep.subr.mxu0 0.0
    %162 = vmatpush1.msra.mxu0 0.0
    %163 = vmatprep.subr.mxu0 0.0
    %164 = vmatpush1.msra.mxu0 0.0
    %165 = vmatprep.subr.mxu0 0.0
    %166 = vmatpush1.msra.mxu0 0.0
    %167 = vmatprep.subr.mxu0 0.0
    %168 = vmatpush1.msra.mxu0 0.0
    %169 = vmatprep.subr.mxu0 0.0
    %170 = vmatpush1.msra.mxu0 0.0
    %171 = vmatprep.subr.mxu0 0.0
    %172 = vmatpush1.msra.mxu0 0.0
    %173 = vmatprep.subr.mxu0 0.0
    %174 = vmatpush1.msra.mxu0 0.0
    %175 = vmatprep.subr.mxu0 0.0
    %176 = vmatpush1.msra.mxu0 0.0
    %177 = vmatprep.subr.mxu0 0.0
    %178 = vmatpush1.msra.mxu0 0.0
    %179 = vmatprep.subr.mxu0 0.0
    %180 = vmatpush1.msra.mxu0 0.0
    %181 = vmatprep.subr.mxu0 0.0
    %182 = vmatpush1.msra.mxu0 %v56
    %183 = vmatprep.subr.mxu0 0.0
    %184 = vmatpush1.msra.mxu0 %v55
    %185 = vmatprep.subr.mxu0 0.0
    %186 = vmatpush2.msra.mxu0 0.0
    %187 = vmatprep.subr.mxu0 0.0
    %188 = vmatpush2.msra.mxu0 0.0
    %189 = vmatprep.subr.mxu0 0.0
    %190 = vmatpush2.msra.mxu0 0.0
    %191 = vmatprep.subr.mxu0 0.0
    %192 = vmatpush2.msra.mxu0 0.0
    %193 = vmatprep.subr.mxu0 0.0
    %194 = vmatpush2.msra.mxu0 0.0
    %195 = vmatprep.subr.mxu0 0.0
    %196 = vmatpush2.msra.mxu0 0.0
    %197 = vmatprep.subr.mxu0 0.0
    %198 = vmatpush2.msra.mxu0 0.0
    %199 = vmatprep.subr.mxu0 0.0
    %200 = vmatpush2.msra.mxu0 0.0
    %201 = vmatprep.subr.mxu0 0.0
    %202 = vmatpush2.msra.mxu0 0.0
    %203 = vmatprep.subr.mxu0 0.0
    %204 = vmatpush2.msra.mxu0 0.0
    %205 = vmatprep.subr.mxu0 0.0
    %206 = vmatpush2.msra.mxu0 0.0
    %207 = vmatprep.subr.mxu0 0.0
    %208 = vmatpush2.msra.mxu0 0.0
    %209 = vmatprep.subr.mxu0 0.0
    %210 = vmatpush2.msra.mxu0 0.0
    %211 = vmatprep.subr.mxu0 0.0
    %212 = vmatpush2.msra.mxu0 0.0
    %213 = vmatprep.subr.mxu0 0.0
    %214 = vmatpush2.msra.mxu0 0.0
    %215 = vmatprep.subr.mxu0 0.0
    %216 = vmatpush2.msra.mxu0 0.0
    %217 = vmatprep.mubr.f32.mxu0 0.0
    %218 = vmatmul.mubr.f32.gmra.mxu0 %v148
    %v219 = vpop.f32.mrf.mxu0
    %v220 = vadd.f32 %v61, %v219
    %v221 = vpop.f32.mrf.mxu0
    %222 = vmatprep.mubr.f32.mxu0 0.0
    %223 = vmatmul.mubr.f32.gmra.mxu0 %v151
    %v224 = vpop.f32.mrf.mxu0
    %v225 = vadd.f32 %v61, %v224
    %v226 = vpop.f32.mrf.mxu0
    %227 = vdwg.mxu0
    %v228 = vmax.f32 %v220, 0.0
    %v229 = vmax.f32 %v225, 0.0
    %v230 = vld [vmem:[%s6] sm:$0xff]
    %v231 = vld [vmem:[%s7] sm:$0x1]
    %v233 = vlaneseq
    %v234 = vshrl.u32 %v233, 7
    %v235 = vsub.s32 0, %v234
    %v236 = vrot.slane %v231, %v235
    %vm238 = vcmask 64512
    %v240 = vsel %vm238, %v52, 0
    %v243 = vsel %vm238, %v53, 0
    %245 = vmatprep.subr.mxu0 0.0
    %246 = vmatpush1.msra.mxu0 0.0
    %247 = vmatprep.subr.mxu0 0.0
    %248 = vmatpush1.msra.mxu0 0.0
    %249 = vmatprep.subr.mxu0 0.0
    %250 = vmatpush1.msra.mxu0 0.0
    %251 = vmatprep.subr.mxu0 0.0
    %252 = vmatpush1.msra.mxu0 0.0
    %253 = vmatprep.subr.mxu0 0.0
    %254 = vmatpush1.msra.mxu0 0.0
    %255 = vmatprep.subr.mxu0 0.0
    %256 = vmatpush1.msra.mxu0 0.0
    %257 = vmatprep.subr.mxu0 0.0
    %258 = vmatpush1.msra.mxu0 0.0
    %259 = vmatprep.subr.mxu0 0.0
    %260 = vmatpush1.msra.mxu0 0.0
    %261 = vmatprep.subr.mxu0 0.0
    %262 = vmatpush1.msra.mxu0 0.0
    %263 = vmatprep.subr.mxu0 0.0
    %264 = vmatpush1.msra.mxu0 0.0
    %265 = vmatprep.subr.mxu0 0.0
    %266 = vmatpush1.msra.mxu0 0.0
    %267 = vmatprep.subr.mxu0 0.0
    %268 = vmatpush1.msra.mxu0 0.0
    %269 = vmatprep.subr.mxu0 0.0
    %270 = vmatpush1.msra.mxu0 0.0
    %271 = vmatprep.subr.mxu0 0.0
    %272 = vmatpush1.msra.mxu0 0.0
    %273 = vmatprep.subr.mxu0 0.0
    %274 = vmatpush1.msra.mxu0 0.0
    %275 = vmatprep.subr.mxu0 0.0
    %276 = vmatpush1.msra.mxu0 %v230
    %277 = vmatprep.subr.mxu0 0.0
    %278 = vmatpush2.msra.mxu0 0.0
    %279 = vmatprep.subr.mxu0 0.0
    %280 = vmatpush2.msra.mxu0 0.0
    %281 = vmatprep.subr.mxu0 0.0
    %282 = vmatpush2.msra.mxu0 0.0
    %283 = vmatprep.subr.mxu0 0.0
    %284 = vmatpush2.msra.mxu0 0.0
    %285 = vmatprep.subr.mxu0 0.0
    %286 = vmatpush2.msra.mxu0 0.0
    %287 = vmatprep.subr.mxu0 0.0
    %288 = vmatpush2.msra.mxu0 0.0
    %289 = vmatprep.subr.mxu0 0.0
    %290 = vmatpush2.msra.mxu0 0.0
    %291 = vmatprep.subr.mxu0 0.0
    %292 = vmatpush2.msra.mxu0 0.0
    %293 = vmatprep.subr.mxu0 0.0
    %294 = vmatpush2.msra.mxu0 0.0
    %295 = vmatprep.subr.mxu0 0.0
    %296 = vmatpush2.msra.mxu0 0.0
    %297 = vmatprep.subr.mxu0 0.0
    %298 = vmatpush2.msra.mxu0 0.0
    %299 = vmatprep.subr.mxu0 0.0
    %300 = vmatpush2.msra.mxu0 0.0
    %301 = vmatprep.subr.mxu0 0.0
    %302 = vmatpush2.msra.mxu0 0.0
    %303 = vmatprep.subr.mxu0 0.0
    %304 = vmatpush2.msra.mxu0 0.0
    %305 = vmatprep.subr.mxu0 0.0
    %306 = vmatpush2.msra.mxu0 0.0
    %307 = vmatprep.subr.mxu0 0.0
    %308 = vmatpush2.msra.mxu0 0.0
    %309 = vmatprep.mubr.f32.mxu0 0.0
    %310 = vmatmul.mubr.f32.gmra.mxu0 %v240
    %v311 = vpop.f32.mrf.mxu0
    %v312 = vadd.f32 %v236, %v311
    %v313 = vpop.f32.mrf.mxu0
    %314 = vmatprep.mubr.f32.mxu0 0.0
    %315 = vmatmul.mubr.f32.gmra.mxu0 %v243
    %v316 = vpop.f32.mrf.mxu0
    %v317 = vadd.f32 %v236, %v316
    %v318 = vpop.f32.mrf.mxu0
    %319 = vdwg.mxu0
    %v320 = vmax.f32 %v312, 0.0
    %v321 = vmax.f32 %v317, 0.0
    %v322 = vld [vmem:[%s3] sm:$0xff]
    %v323 = vld [vmem:[%s3 + $0x8] sm:$0xff]
    %v324 = vadd.f32 %v145, %v228
    %v325 = vadd.f32 %v146, %v229
    %327 = vset.pattern.permute.xlu0 0
    %328 = vperm.xlu0 %327, %v322
    %v329 = vpop.permute.xlu0 %328
    %332 = vset.pattern.permute.xlu0 0
    %333 = vperm.xlu0 %332, %v323
    %v334 = vpop.permute.xlu0 %333
    %v336 = vmul.f32 %v329, %v324
    %v337 = vmul.f32 %v334, %v325
    %v338 = vrot.slane %v336, 4
    %v339 = vadd.f32 %v336, %v338
    %v340 = vrot.slane %v339, 2
    %v341 = vadd.f32 %v339, %v340
    %v342 = vrot.slane %v341, 1
    %v343 = vadd.f32 %v341, %v342
    %v344 = vrot.slane %v337, 4
    %v345 = vadd.f32 %v337, %v344
    %v346 = vrot.slane %v345, 2
    %v347 = vadd.f32 %v345, %v346
    %v348 = vrot.slane %v347, 1
    %v349 = vadd.f32 %v347, %v348
    %v350 = vmul.f32 %v329, %v320
    %v351 = vmul.f32 %v334, %v321
    %v352 = vrot.slane %v350, 4
    %v353 = vadd.f32 %v350, %v352
    %v354 = vrot.slane %v353, 2
    %v355 = vadd.f32 %v353, %v354
    %v356 = vrot.slane %v355, 1
    %v357 = vadd.f32 %v355, %v356
    %v358 = vrot.slane %v351, 4
    %v359 = vadd.f32 %v351, %v358
    %v360 = vrot.slane %v359, 2
    %v361 = vadd.f32 %v359, %v360
    %v362 = vrot.slane %v361, 1
    %v363 = vadd.f32 %v361, %v362
    %vm364 = vcmask 7168
    %v365 = vsel %vm364, %v322, 0.0
    %v366 = vrot.slane %v365, 4
    %v367 = vadd.f32 %v365, %v366
    %v368 = vrot.slane %v367, 2
    %v369 = vadd.f32 %v367, %v368
    %v370 = vrot.slane %v369, 1
    %v371 = vadd.f32 %v369, %v370
    %v372 = vsel %vm364, %v323, 0.0
    %v373 = vrot.slane %v372, 4
    %v374 = vadd.f32 %v372, %v373
    %v375 = vrot.slane %v374, 2
    %v376 = vadd.f32 %v374, %v375
    %v377 = vrot.slane %v376, 1
    %v378 = vadd.f32 %v376, %v377
    %vm381 = vcmask 1041409
    %v382 = vsel %vm381, %v349, %v343
    %v386 = vsel %vm381, %v363, %v357
    %v388 = vld [vmem:[%s8] sm:$0xff]
    %v389 = vld [vmem:[%s8 + $0x8] sm:$0xff]
    %v390 = vld [vmem:[%s8 + $0x10] sm:$0xff]
    %v391 = vld [vmem:[%s8 + $0x18] sm:$0xff]
    %v392 = vld [vmem:[%s8 + $0x20] sm:$0xff]
    %v393 = vld [vmem:[%s8 + $0x28] sm:$0xff]
    %v394 = vld [vmem:[%s8 + $0x30] sm:$0xff]
    %v395 = vld [vmem:[%s8 + $0x38] sm:$0xff]
    %v396 = vld [vmem:[%s8 + $0x40] sm:$0xff]
    %v397 = vld [vmem:[%s8 + $0x48] sm:$0xff]
    %v398 = vld [vmem:[%s8 + $0x50] sm:$0xff]
    %v399 = vld [vmem:[%s8 + $0x58] sm:$0xff]
    %v400 = vld [vmem:[%s8 + $0x60] sm:$0xff]
    %v401 = vld [vmem:[%s8 + $0x68] sm:$0xff]
    %v402 = vld [vmem:[%s8 + $0x70] sm:$0xff]
    %v403 = vld [vmem:[%s8 + $0x78] sm:$0xff]
    %v404 = vld [vmem:[%s8 + $0x80] sm:$0xff]
    %v405 = vld [vmem:[%s8 + $0x88] sm:$0xff]
    %v406 = vld [vmem:[%s8 + $0x90] sm:$0xff]
    %v407 = vld [vmem:[%s8 + $0x98] sm:$0xff]
    %v408 = vld [vmem:[%s8 + $0xa0] sm:$0xff]
    %v409 = vld [vmem:[%s8 + $0xa8] sm:$0xff]
    %v410 = vld [vmem:[%s8 + $0xb0] sm:$0xff]
    %v411 = vld [vmem:[%s8 + $0xb8] sm:$0xff]
    %v412 = vld [vmem:[%s8 + $0xc0] sm:$0xff]
    %v413 = vld [vmem:[%s8 + $0xc8] sm:$0xff]
    %v414 = vld [vmem:[%s8 + $0xd0] sm:$0xff]
    %v415 = vld [vmem:[%s8 + $0xd8] sm:$0xff]
    %v416 = vld [vmem:[%s8 + $0xe0] sm:$0xff]
    %v417 = vld [vmem:[%s8 + $0xe8] sm:$0xff]
    %v418 = vld [vmem:[%s8 + $0xf0] sm:$0xff]
    %v419 = vld [vmem:[%s8 + $0xf8] sm:$0xff]
    %v420 = vld [vmem:[%s9] sm:$0x1]
    %422 = vset.pattern.permute.xlu0 0
    %423 = vperm.xlu0 %422, %v371
    %v424 = vpop.permute.xlu0 %423
    %427 = vset.pattern.permute.xlu0 0
    %428 = vperm.xlu0 %427, %v378
    %v429 = vpop.permute.xlu0 %428
    %v432 = vlaneseq
    %v433 = vshrl.u32 %v432, 7
    %v434 = vsub.s32 0, %v433
    %v435 = vrot.slane %v420, %v434
    %v437 = vmul.f32 %v424, %v435
    %v438 = vmul.f32 %v429, %v435
    %v441 = vrot.slane %v438, 7
    %v442 = vsel %vm381, %v441, %v437
    %444 = vmatprep.subr.mxu0 0.0
    %445 = vmatpush1.msra.mxu0 %v403
    %446 = vmatprep.subr.mxu0 0.0
    %447 = vmatpush1.msra.mxu0 %v402
    %448 = vmatprep.subr.mxu0 0.0
    %449 = vmatpush1.msra.mxu0 %v401
    %450 = vmatprep.subr.mxu0 0.0
    %451 = vmatpush1.msra.mxu0 %v400
    %452 = vmatprep.subr.mxu0 0.0
    %453 = vmatpush1.msra.mxu0 %v399
    %454 = vmatprep.subr.mxu0 0.0
    %455 = vmatpush1.msra.mxu0 %v398
    %456 = vmatprep.subr.mxu0 0.0
    %457 = vmatpush1.msra.mxu0 %v397
    %458 = vmatprep.subr.mxu0 0.0
    %459 = vmatpush1.msra.mxu0 %v396
    %460 = vmatprep.subr.mxu0 0.0
    %461 = vmatpush1.msra.mxu0 %v395
    %462 = vmatprep.subr.mxu0 0.0
    %463 = vmatpush1.msra.mxu0 %v394
    %464 = vmatprep.subr.mxu0 0.0
    %465 = vmatpush1.msra.mxu0 %v393
    %466 = vmatprep.subr.mxu0 0.0
    %467 = vmatpush1.msra.mxu0 %v392
    %468 = vmatprep.subr.mxu0 0.0
    %469 = vmatpush1.msra.mxu0 %v391
    %470 = vmatprep.subr.mxu0 0.0
    %471 = vmatpush1.msra.mxu0 %v390
    %472 = vmatprep.subr.mxu0 0.0
    %473 = vmatpush1.msra.mxu0 %v389
    %474 = vmatprep.subr.mxu0 0.0
    %475 = vmatpush1.msra.mxu0 %v388
    %476 = vmatprep.subr.mxu0 0.0
    %477 = vmatpush2.msra.mxu0 %v419
    %478 = vmatprep.subr.mxu0 0.0
    %479 = vmatpush2.msra.mxu0 %v418
    %480 = vmatprep.subr.mxu0 0.0
    %481 = vmatpush2.msra.mxu0 %v417
    %482 = vmatprep.subr.mxu0 0.0
    %483 = vmatpush2.msra.mxu0 %v416
    %484 = vmatprep.subr.mxu0 0.0
    %485 = vmatpush2.msra.mxu0 %v415
    %486 = vmatprep.subr.mxu0 0.0
    %487 = vmatpush2.msra.mxu0 %v414
    %488 = vmatprep.subr.mxu0 0.0
    %489 = vmatpush2.msra.mxu0 %v413
    %490 = vmatprep.subr.mxu0 0.0
    %491 = vmatpush2.msra.mxu0 %v412
    %492 = vmatprep.subr.mxu0 0.0
    %493 = vmatpush2.msra.mxu0 %v411
    %494 = vmatprep.subr.mxu0 0.0
    %495 = vmatpush2.msra.mxu0 %v410
    %496 = vmatprep.subr.mxu0 0.0
    %497 = vmatpush2.msra.mxu0 %v409
    %498 = vmatprep.subr.mxu0 0.0
    %499 = vmatpush2.msra.mxu0 %v408
    %500 = vmatprep.subr.mxu0 0.0
    %501 = vmatpush2.msra.mxu0 %v407
    %502 = vmatprep.subr.mxu0 0.0
    %503 = vmatpush2.msra.mxu0 %v406
    %504 = vmatprep.subr.mxu0 0.0
    %505 = vmatpush2.msra.mxu0 %v405
    %506 = vmatprep.subr.mxu0 0.0
    %507 = vmatpush2.msra.mxu0 %v404
    %508 = vmatprep.mubr.f32.mxu0 %v386
    %509 = vmatmul.mubr.f32.gmra.mxu0 %v382
    %v510 = vpop.f32.mrf.mxu0
    %v511 = vadd.f32 %v442, %v510
    %v512 = vpop.f32.mrf.mxu0
    %513 = vdwg.mxu0
    %v514 = vld [vmem:[%s10] sm:$0xff]
    %v515 = vld [vmem:[%s10 + $0x8] sm:$0xff]
    %v516 = vld [vmem:[%s10 + $0x10] sm:$0xff]
    %v517 = vld [vmem:[%s10 + $0x18] sm:$0xff]
    %v518 = vld [vmem:[%s10 + $0x20] sm:$0xff]
    %v519 = vld [vmem:[%s10 + $0x28] sm:$0xff]
    %v520 = vld [vmem:[%s10 + $0x30] sm:$0xff]
    %v521 = vld [vmem:[%s10 + $0x38] sm:$0xff]
    %v522 = vld [vmem:[%s10 + $0x40] sm:$0xff]
    %v523 = vld [vmem:[%s10 + $0x48] sm:$0xff]
    %v524 = vld [vmem:[%s10 + $0x50] sm:$0xff]
    %v525 = vld [vmem:[%s10 + $0x58] sm:$0xff]
    %v526 = vld [vmem:[%s10 + $0x60] sm:$0xff]
    %v527 = vld [vmem:[%s10 + $0x68] sm:$0xff]
    %v528 = vld [vmem:[%s10 + $0x70] sm:$0xff]
    %v529 = vld [vmem:[%s10 + $0x78] sm:$0xff]
    %v530 = vld [vmem:[%s11] sm:$0x1]
    %v532 = vlaneseq
    %v533 = vshrl.u32 %v532, 7
    %v534 = vsub.s32 0, %v533
    %v535 = vrot.slane %v530, %v534
    %537 = vmatprep.subr.mxu0 0.0
    %538 = vmatpush1.msra.mxu0 %v529
    %539 = vmatprep.subr.mxu0 0.0
    %540 = vmatpush1.msra.mxu0 %v528
    %541 = vmatprep.subr.mxu0 0.0
    %542 = vmatpush1.msra.mxu0 %v527
    %543 = vmatprep.subr.mxu0 0.0
    %544 = vmatpush1.msra.mxu0 %v526
    %545 = vmatprep.subr.mxu0 0.0
    %546 = vmatpush1.msra.mxu0 %v525
    %547 = vmatprep.subr.mxu0 0.0
    %548 = vmatpush1.msra.mxu0 %v524
    %549 = vmatprep.subr.mxu0 0.0
    %550 = vmatpush1.msra.mxu0 %v523
    %551 = vmatprep.subr.mxu0 0.0
    %552 = vmatpush1.msra.mxu0 %v522
    %553 = vmatprep.subr.mxu0 0.0
    %554 = vmatpush1.msra.mxu0 %v521
    %555 = vmatprep.subr.mxu0 0.0
    %556 = vmatpush1.msra.mxu0 %v520
    %557 = vmatprep.subr.mxu0 0.0
    %558 = vmatpush1.msra.mxu0 %v519
    %559 = vmatprep.subr.mxu0 0.0
    %560 = vmatpush1.msra.mxu0 %v518
    %561 = vmatprep.subr.mxu0 0.0
    %562 = vmatpush1.msra.mxu0 %v517
    %563 = vmatprep.subr.mxu0 0.0
    %564 = vmatpush1.msra.mxu0 %v516
    %565 = vmatprep.subr.mxu0 0.0
    %566 = vmatpush1.msra.mxu0 %v515
    %567 = vmatprep.subr.mxu0 0.0
    %568 = vmatpush1.msra.mxu0 %v514
    %569 = vmatprep.subr.mxu0 0.0
    %570 = vmatpush2.msra.mxu0 0.0
    %571 = vmatprep.subr.mxu0 0.0
    %572 = vmatpush2.msra.mxu0 0.0
    %573 = vmatprep.subr.mxu0 0.0
    %574 = vmatpush2.msra.mxu0 0.0
    %575 = vmatprep.subr.mxu0 0.0
    %576 = vmatpush2.msra.mxu0 0.0
    %577 = vmatprep.subr.mxu0 0.0
    %578 = vmatpush2.msra.mxu0 0.0
    %579 = vmatprep.subr.mxu0 0.0
    %580 = vmatpush2.msra.mxu0 0.0
    %581 = vmatprep.subr.mxu0 0.0
    %582 = vmatpush2.msra.mxu0 0.0
    %583 = vmatprep.subr.mxu0 0.0
    %584 = vmatpush2.msra.mxu0 0.0
    %585 = vmatprep.subr.mxu0 0.0
    %586 = vmatpush2.msra.mxu0 0.0
    %587 = vmatprep.subr.mxu0 0.0
    %588 = vmatpush2.msra.mxu0 0.0
    %589 = vmatprep.subr.mxu0 0.0
    %590 = vmatpush2.msra.mxu0 0.0
    %591 = vmatprep.subr.mxu0 0.0
    %592 = vmatpush2.msra.mxu0 0.0
    %593 = vmatprep.subr.mxu0 0.0
    %594 = vmatpush2.msra.mxu0 0.0
    %595 = vmatprep.subr.mxu0 0.0
    %596 = vmatpush2.msra.mxu0 0.0
    %597 = vmatprep.subr.mxu0 0.0
    %598 = vmatpush2.msra.mxu0 0.0
    %599 = vmatprep.subr.mxu0 0.0
    %600 = vmatpush2.msra.mxu0 0.0
    %601 = vmatprep.mubr.f32.mxu0 0.0
    %602 = vmatmul.mubr.f32.gmra.mxu0 %v511
    %v603 = vpop.f32.mrf.mxu0
    %v604 = vadd.f32 %v535, %v603
    %v605 = vpop.f32.mrf.mxu0
    %606 = vdwg.mxu0
    %v607 = vmax.f32 %v604, 0.0
    %v608 = vld [vmem:[%s12] sm:$0xff]
    %v609 = vld [vmem:[%s12 + $0x8] sm:$0xff]
    %v610 = vld [vmem:[%s12 + $0x10] sm:$0xff]
    %v611 = vld [vmem:[%s12 + $0x18] sm:$0xff]
    %v612 = vld [vmem:[%s12 + $0x20] sm:$0xff]
    %v613 = vld [vmem:[%s12 + $0x28] sm:$0xff]
    %v614 = vld [vmem:[%s12 + $0x30] sm:$0xff]
    %v615 = vld [vmem:[%s12 + $0x38] sm:$0xff]
    %v616 = vld [vmem:[%s12 + $0x40] sm:$0xff]
    %v617 = vld [vmem:[%s12 + $0x48] sm:$0xff]
    %v618 = vld [vmem:[%s12 + $0x50] sm:$0xff]
    %v619 = vld [vmem:[%s12 + $0x58] sm:$0xff]
    %v620 = vld [vmem:[%s12 + $0x60] sm:$0xff]
    %v621 = vld [vmem:[%s12 + $0x68] sm:$0xff]
    %v622 = vld [vmem:[%s12 + $0x70] sm:$0xff]
    %v623 = vld [vmem:[%s12 + $0x78] sm:$0xff]
    %v624 = vld [vmem:[%s13] sm:$0x1]
    %v626 = vlaneseq
    %v627 = vshrl.u32 %v626, 7
    %v628 = vsub.s32 0, %v627
    %v629 = vrot.slane %v624, %v628
    %631 = vmatprep.subr.mxu0 0.0
    %632 = vmatpush1.msra.mxu0 %v623
    %633 = vmatprep.subr.mxu0 0.0
    %634 = vmatpush1.msra.mxu0 %v622
    %635 = vmatprep.subr.mxu0 0.0
    %636 = vmatpush1.msra.mxu0 %v621
    %637 = vmatprep.subr.mxu0 0.0
    %638 = vmatpush1.msra.mxu0 %v620
    %639 = vmatprep.subr.mxu0 0.0
    %640 = vmatpush1.msra.mxu0 %v619
    %641 = vmatprep.subr.mxu0 0.0
    %642 = vmatpush1.msra.mxu0 %v618
    %643 = vmatprep.subr.mxu0 0.0
    %644 = vmatpush1.msra.mxu0 %v617
    %645 = vmatprep.subr.mxu0 0.0
    %646 = vmatpush1.msra.mxu0 %v616
    %647 = vmatprep.subr.mxu0 0.0
    %648 = vmatpush1.msra.mxu0 %v615
    %649 = vmatprep.subr.mxu0 0.0
    %650 = vmatpush1.msra.mxu0 %v614
    %651 = vmatprep.subr.mxu0 0.0
    %652 = vmatpush1.msra.mxu0 %v613
    %653 = vmatprep.subr.mxu0 0.0
    %654 = vmatpush1.msra.mxu0 %v612
    %655 = vmatprep.subr.mxu0 0.0
    %656 = vmatpush1.msra.mxu0 %v611
    %657 = vmatprep.subr.mxu0 0.0
    %658 = vmatpush1.msra.mxu0 %v610
    %659 = vmatprep.subr.mxu0 0.0
    %660 = vmatpush1.msra.mxu0 %v609
    %661 = vmatprep.subr.mxu0 0.0
    %662 = vmatpush1.msra.mxu0 %v608
    %663 = vmatprep.subr.mxu0 0.0
    %664 = vmatpush2.msra.mxu0 0.0
    %665 = vmatprep.subr.mxu0 0.0
    %666 = vmatpush2.msra.mxu0 0.0
    %667 = vmatprep.subr.mxu0 0.0
    %668 = vmatpush2.msra.mxu0 0.0
    %669 = vmatprep.subr.mxu0 0.0
    %670 = vmatpush2.msra.mxu0 0.0
    %671 = vmatprep.subr.mxu0 0.0
    %672 = vmatpush2.msra.mxu0 0.0
    %673 = vmatprep.subr.mxu0 0.0
    %674 = vmatpush2.msra.mxu0 0.0
    %675 = vmatprep.subr.mxu0 0.0
    %676 = vmatpush2.msra.mxu0 0.0
    %677 = vmatprep.subr.mxu0 0.0
    %678 = vmatpush2.msra.mxu0 0.0
    %679 = vmatprep.subr.mxu0 0.0
    %680 = vmatpush2.msra.mxu0 0.0
    %681 = vmatprep.subr.mxu0 0.0
    %682 = vmatpush2.msra.mxu0 0.0
    %683 = vmatprep.subr.mxu0 0.0
    %684 = vmatpush2.msra.mxu0 0.0
    %685 = vmatprep.subr.mxu0 0.0
    %686 = vmatpush2.msra.mxu0 0.0
    %687 = vmatprep.subr.mxu0 0.0
    %688 = vmatpush2.msra.mxu0 0.0
    %689 = vmatprep.subr.mxu0 0.0
    %690 = vmatpush2.msra.mxu0 0.0
    %691 = vmatprep.subr.mxu0 0.0
    %692 = vmatpush2.msra.mxu0 0.0
    %693 = vmatprep.subr.mxu0 0.0
    %694 = vmatpush2.msra.mxu0 0.0
    %695 = vmatprep.mubr.f32.mxu0 0.0
    %696 = vmatmul.mubr.f32.gmra.mxu0 %v607
    %v697 = vpop.f32.mrf.mxu0
    %v698 = vadd.f32 %v629, %v697
    %v699 = vpop.f32.mrf.mxu0
    %700 = vdwg.mxu0
    %701 = vst [vmem:[#allocation2] sm:$0x3] %v698
    // Predicated region
    $region58: #{simple_gnn_pallas.1} parent=1 // pred_check
      _
    $region59: #{simple_gnn_pallas.1} parent=1 // pred_check_branch
      %703 = sbr.rel (0) target = $region61
    $region60: #{simple_gnn_pallas.1} parent=1 // pred_region
      %s705 = ssub.s32 32, 32
      %706 = vsyncadd [#allocation3], %s705
      %s708 = sshll.u32 [#allocation2], 4
      %s709 = int_to_ptr.vmem [resolvable:$true] %s708
      %711 = dma.vmem_to_hbm [thread:$0]  %s709, 32, %s14, [#allocation3]
    $region61: #{simple_gnn_pallas.1} parent=1 // pred_fallthru
      _
    // Predicated region
    $region62: #{simple_gnn_pallas.1} parent=1 // pred_check
      _
    $region63: #{simple_gnn_pallas.1} parent=1 // pred_check_branch
      %713 = sbr.rel (0) target = $region65
    $region64: #{simple_gnn_pallas.1} parent=1 // pred_region
      %714 = dma.done [#allocation3], 32
    $region65: #{simple_gnn_pallas.1} parent=1 // pred_fallthru
      _
    %715 = vsyncpa [#allocation3], 1

</llo_original>
